<compile_context>
chip_gen: v7x
topology: tpu7x:2x2x1
jax: 0.10.0
libtpu: 0.0.40
codegen_flags: <defaults>
</compile_context>

<pallas_src>
import numpy as np
import jax
import jax.numpy as jnp
from jax.experimental import pallas as pl
from jax.experimental.pallas import tpu as pltpu


# ---------------------------------------------------------------------------
# Deterministic table construction (direct numpy port of the PyTorch buffers)
# ---------------------------------------------------------------------------
def get_sinusoid_encoding_table(n_position, d_hid, base):
    def get_position_angle_vec(position):
        return [position / np.power(base, 2 * (j // 2) / d_hid) for j in range(d_hid)]

    table = np.array([get_position_angle_vec(p) for p in range(n_position)])
    table[:, 0::2] = np.sin(table[:, 0::2])
    table[:, 1::2] = np.cos(table[:, 1::2])
    return table[np.newaxis].astype(np.float32)  # (1, n_position, d_hid)


def get_1d_sincos_pos_embed_from_grid(embed_dim, pos, base):
    assert embed_dim % 2 == 0
    omega = np.arange(embed_dim // 2, dtype=np.float64)
    omega /= embed_dim / 2.0
    omega = 1.0 / base ** omega
    pos = pos.reshape(-1)
    out = np.einsum("m,d->md", pos, omega)
    emb_sin = np.sin(out)
    emb_cos = np.cos(out)
    return np.stack([emb_sin, emb_cos], axis=2).reshape((-1, embed_dim))


def get_2d_sincos_pos_embed(grid_size, embed_dim, base, base_size=16, lewei_scale=1.0):
    if isinstance(grid_size, int):
        grid_size = (grid_size, grid_size)
    grid_h = np.arange(grid_size[0], dtype=np.float32) / (grid_size[0] / base_size) / lewei_scale
    grid_w = np.arange(grid_size[1], dtype=np.float32) / (grid_size[1] / base_size) / lewei_scale
    grid = np.meshgrid(grid_w, grid_h)
    grid = np.stack(grid, axis=0)
    grid = grid.reshape([2, 1, grid_size[1], grid_size[0]])
    assert embed_dim % 2 == 0
    emb_h = get_1d_sincos_pos_embed_from_grid(embed_dim // 2, grid[0], base)
    emb_w = get_1d_sincos_pos_embed_from_grid(embed_dim // 2, grid[1], base)
    pos_embed = np.stack([emb_h, emb_w], axis=2).reshape((-1, embed_dim))
    return pos_embed[np.newaxis].astype(np.float32)  # (1, grid*grid, embed_dim)


# ---------------------------------------------------------------------------
# Pallas kernels: fused broadcast adds of the positional tables into x.
# All arithmetic in f32 (v5e has no bf16 VALU); result stored in x.dtype.
# Block layouts:
#   x/out : (1, N, tl, D)
#   vec   : (1, N, 1,  D)   per-(batch) view PE with modality PE folded in
#   tok   : (1, 1, tl, D)   token/patch PE tile (shared across b, n)
# ---------------------------------------------------------------------------
def _add_vec_tok_kernel(x_ref, vec_ref, tok_ref, o_ref):
    x = x_ref[...].astype(jnp.float32)
    o_ref[...] = (x + vec_ref[...].astype(jnp.float32)
                  + tok_ref[...].astype(jnp.float32)).astype(o_ref.dtype)


def _add_vec_kernel(x_ref, vec_ref, o_ref):
    x = x_ref[...].astype(jnp.float32)
    o_ref[...] = (x + vec_ref[...].astype(jnp.float32)).astype(o_ref.dtype)


def _add_tok_kernel(x_ref, tok_ref, o_ref):
    x = x_ref[...].astype(jnp.float32)
    o_ref[...] = (x + tok_ref[...].astype(jnp.float32)).astype(o_ref.dtype)


def _tpu_vmem_capacity_bytes():
    """Physical VMEM per core; conservative 64 MiB (v7x) fallback."""
    try:
        info = pltpu.get_tpu_info()
        cap = getattr(info, "vmem_capacity_bytes", None)
        if cap:
            return int(cap)
    except Exception:
        pass
    return 64 << 20


def _pick_l_tile(L, N, D, x_bytes, tok_bytes, vec_bytes, budget_bytes):
    """Largest multiple-of-8 L-tile whose double-buffered working set
    (x + out + tok tile + vec block) stays under budget_bytes.

    Never falls back to an oversized full-L block: if L doesn't fit, returns
    a multiple-of-8 tile and the caller uses grid=pl.cdiv(L, tl) (Pallas
    masks the boundary block)."""
    per_l = N * D * (2 * x_bytes) + D * tok_bytes      # bytes per unit of tl, one buffer
    fixed = N * D * vec_bytes                          # tl-independent, one buffer
    cap = (budget_bytes // 2 - fixed) // max(per_l, 1)
    cap = max(8, int(cap))
    if L <= cap:
        return L                                       # single block covers full L
    return max(8, (cap // 8) * 8)


def pe_add_pallas(x, vec_pe=None, tok_pe=None):
    """x: (B, N, L, D) native dtype.
    vec_pe: (Bv, N, 1, D) with Bv in {1, B}, or None.
    tok_pe: (1, 1, L, D) or None.
    Returns x + vec_pe + tok_pe in x.dtype."""
    B, N, L, D = x.shape
    if vec_pe is None and tok_pe is None:
        return x  # nothing to add (matches torch: x + 0 leaves x unchanged)

    x_bytes = jnp.dtype(x.dtype).itemsize
    tok_bytes = jnp.dtype(tok_pe.dtype).itemsize if tok_pe is not None else 0
    vec_bytes = jnp.dtype(vec_pe.dtype).itemsize if vec_pe is not None else 0

    phys_vmem = _tpu_vmem_capacity_bytes()
    budget = max(16 << 20, phys_vmem * 3 // 8)          # ~24 MiB v7x, ~48 MiB v5e/v6e
    tl = _pick_l_tile(L, N, D, x_bytes, tok_bytes, vec_bytes, budget)
    num_l = pl.cdiv(L, tl)

    # Actual double-buffered working set -> scoped VMEM limit with slack.
    working = 2 * (N * tl * D * 2 * x_bytes + tl * D * tok_bytes + N * D * vec_bytes)
    vmem_limit = int(min(phys_vmem * 3 // 4, max(32 << 20, working + (16 << 20))))

    # x / out blocks carry the whole N axis: grid-step count is num_l * B only.
    x_spec = pl.BlockSpec((1, N, tl, D), lambda l, b: (b, 0, l, 0))
    out_spec = pl.BlockSpec((1, N, tl, D), lambda l, b: (b, 0, l, 0))

    in_specs = [x_spec]
    operands = [x]
    if vec_pe is not None:
        if vec_pe.shape[0] == 1:
            vec_map = lambda l, b: (0, 0, 0, 0)          # constant: DMA'd once
        else:
            vec_map = lambda l, b: (b, 0, 0, 0)
        in_specs.append(pl.BlockSpec((1, N, 1, D), vec_map))
        operands.append(vec_pe)
    if tok_pe is not None:
        # Constant in b (the inner grid axis) -> re-DMA elided; the token
        # table is streamed from HBM only once per L-tile.
        in_specs.append(pl.BlockSpec((1, 1, tl, D), lambda l, b: (0, 0, l, 0)))
        operands.append(tok_pe)

    if vec_pe is not None and tok_pe is not None:
        kernel = _add_vec_tok_kernel
    elif vec_pe is not None:
        kernel = _add_vec_kernel
    else:
        kernel = _add_tok_kernel

    # TODO(synk): input_output_aliases={0: 0} could drop the extra HBM output
    # allocation once callers are happy to donate x.
    return pl.pallas_call(
        kernel,
        out_shape=jax.ShapeDtypeStruct((B, N, L, D), x.dtype),
        grid_spec=pltpu.PrefetchScalarGridSpec(
            num_scalar_prefetch=0,
            grid=(num_l, B),   # largest axis first for megacore sharding
            in_specs=in_specs,
            out_specs=out_spec,
        ),
        compiler_params=pltpu.CompilerParams(
            dimension_semantics=("parallel", "parallel"),
            vmem_limit_bytes=vmem_limit,
        ),
    )(*operands)


# ---------------------------------------------------------------------------
# Module wrapper
# ---------------------------------------------------------------------------
class FeaturePositionalEncodingPallas:
    mod_ind_table = {'rgb': 0, 'ray': 1, 'depth': 2, 'local_caption': 3, 'global_caption': 4}

    def __init__(self, pe_config, feature_dim=1152, num_heads=16, grid_size=64):
        self.pe_config = pe_config
        self.feature_dim = feature_dim
        self.grid_size = grid_size
        assert pe_config['view']['type'] == 'sinusoid'
        assert pe_config['pos']['type'] == 'sinusoid'
        self.view_pos_table = jnp.asarray(
            get_sinusoid_encoding_table(pe_config['view']['max'], feature_dim,
                                        pe_config['view']['base']))
        self.token_pos_table = jnp.asarray(
            get_2d_sincos_pos_embed(grid_size, feature_dim, pe_config['pos']['base'],
                                    base_size=pe_config['pos']['base_size']))
        if pe_config['mod']['max'] > 1:
            assert pe_config['mod']['type'] == 'sinusoid'
            self.mod_pos_table = jnp.asarray(
                get_sinusoid_encoding_table(pe_config['mod']['max'], feature_dim,
                                            pe_config['mod']['base']))
        else:
            self.mod_pos_table = None
        # TODO(synk): 'rope' / 'sinusoid_all' config branches are not implemented
        # in this kernel (config used is all-'sinusoid').

    def forward(self, x, mod_ind, view_ids=None, zero_view_pe=False, zero_patch_pe=False):
        if x.ndim == 5:
            B, N, H, W, D = x.shape
            L = H * W
            x = x.reshape(B, N, L, D)
        elif x.ndim == 4:
            B, N, L, D = x.shape
        else:
            raise ValueError('Invalid input shape. Expected (B, N, H, W, D) or (B, N, L, D)')

        # Stream the PE tables in bf16 when x is bf16 (halves their HBM
        # traffic); arithmetic is still f32 inside the kernel.
        pe_dtype = jnp.bfloat16 if x.dtype == jnp.bfloat16 else jnp.float32

        # --- per-(b, n) vector PE: view PE (+ modality PE folded in) --------
        vec = None
        if not zero_view_pe:
            if view_ids is not None:
                vec = self.view_pos_table[0][jnp.asarray(view_ids).reshape(-1), :D]
                vec = vec.reshape(B, N, 1, D)
            else:
                vec = self.view_pos_table[:, :N, :D].reshape(1, N, 1, D)
        if self.mod_pos_table is not None:
            mod_pe = self.mod_pos_table[:, mod_ind, :D].reshape(1, 1, 1, D)
            vec = mod_pe if vec is None else vec + mod_pe
        if vec is not None:
            vec = jnp.broadcast_to(vec, (vec.shape[0], N, 1, D)).astype(pe_dtype)

        # --- token/patch PE (skipped entirely when zero_patch_pe) -----------
        tok = None
        if not zero_patch_pe:
            tok = self.token_pos_table[:, :L, :D].reshape(1, 1, L, D).astype(pe_dtype)

        # TODO(synk): if production D is ever not a multiple of 128, output
        # stores degrade to masked vst (fine for the D=32 demo below).
        out = pe_add_pallas(x, vec, tok)
        pe_dict = {'rope': None, 'sinusoid_all': None}
        return out, pe_dict


# ---------------------------------------------------------------------------
if __name__ == "__main__":
    # Small config consistent with the module
    B, N, H, W, D = 2, 3, 4, 4, 32     # L = 16 patches, feature_dim = 32
    pe_config = {
        'view': {'type': 'sinusoid', 'max': 8, 'base': 10000},
        'pos':  {'type': 'sinusoid', 'base': 10000, 'base_size': 16},
        'mod':  {'type': 'sinusoid', 'max': 5, 'base': 10000},
    }
    module = FeaturePositionalEncodingPallas(pe_config, feature_dim=D,
                                             num_heads=4, grid_size=H)

    key = jax.random.PRNGKey(0)
    x = jax.random.normal(key, (B, N, H, W, D), dtype=jnp.float32)
    mod_ind = FeaturePositionalEncodingPallas.mod_ind_table['rgb']

    L = H * W
    x4 = x.reshape(B, N, L, D)
    pe_view = module.view_pos_table[:, :N, :D].reshape(1, N, 1, D)
    pe_tok = module.token_pos_table[:, :L, :D].reshape(1, 1, L, D)
    pe_mod = module.mod_pos_table[:, mod_ind, :D].reshape(1, 1, 1, D)

    # --- run 1: f32, default view ordering --------------------------------
    out, pe_dict = module.forward(x, mod_ind)
    out = jax.block_until_ready(out)
    ref = x4 + pe_view + pe_tok + pe_mod
    assert out.shape == (B, N, L, D)
    assert out.dtype == x.dtype
    assert pe_dict == {'rope': None, 'sinusoid_all': None}
    np.testing.assert_allclose(np.asarray(out), np.asarray(ref), rtol=1e-5, atol=1e-5)

    # --- run 2: bf16 input + explicit view_ids (exercises gather, bf16 table
    # streaming + in-kernel f32 upcast; output stays bf16) ------------------
    x_bf16 = x.astype(jnp.bfloat16)
    view_ids = jnp.array([[0, 2, 4], [1, 3, 5]], dtype=jnp.int32)
    out_bf16, _ = module.forward(x_bf16, mod_ind, view_ids=view_ids)
    out_bf16 = jax.block_until_ready(out_bf16)
    assert out_bf16.dtype == jnp.bfloat16
    x4_bf16 = x_bf16.reshape(B, N, L, D)   # reshape BEFORE building the 4-D reference
    pe_view_ids = module.view_pos_table[0][view_ids.reshape(-1), :D].reshape(B, N, 1, D)
    ref_bf16 = (x4_bf16.astype(jnp.float32) + pe_view_ids + pe_tok + pe_mod).astype(jnp.bfloat16)
    np.testing.assert_allclose(np.asarray(out_bf16, dtype=np.float32),
                               np.asarray(ref_bf16, dtype=np.float32),
                               rtol=5e-2, atol=5e-2)

    # --- run 3: zero_patch_pe (token stream dropped -> 2-operand kernel) ---
    out_zp, _ = module.forward(x4, mod_ind, zero_patch_pe=True)
    out_zp = jax.block_until_ready(out_zp)
    ref_zp = x4 + pe_view + pe_mod
    np.testing.assert_allclose(np.asarray(out_zp), np.asarray(ref_zp), rtol=1e-5, atol=1e-5)

    print("KERNEL_OK")
</pallas_src>

<mosaic_0001>
module attributes {stable_mosaic.version = 11 : i64} {
  func.func @_add_vec_tok_kernel(%arg0: i32, %arg1: i32, %arg2: memref<1x3x16x32xf32, #tpu.memory_space<vmem>>, %arg3: memref<1x3x1x32xf32, #tpu.memory_space<vmem>>, %arg4: memref<1x1x16x32xf32, #tpu.memory_space<vmem>>, %arg5: memref<1x3x16x32xf32, #tpu.memory_space<vmem>>) attributes {dimension_semantics = [#tpu.dimension_semantics<parallel>, #tpu.dimension_semantics<parallel>], iteration_bounds = array<i64: 1, 2>, scalar_prefetch = 0 : i64, scratch_operands = 0 : i64, tpu.core_type = #tpu.core_type<tc>, window_params = [{transform_indices = @transform_0, window_bounds = array<i64: 1, 3, 16, 32>}, {pipeline_mode = #tpu.pipeline_mode<synchronous>, transform_indices = @transform_1, window_bounds = array<i64: 1, 3, 1, 32>}, {transform_indices = @transform_2, window_bounds = array<i64: 1, 1, 16, 32>}, {transform_indices = @transform_3, window_bounds = array<i64: 1, 3, 16, 32>}]} {
    %c0 = arith.constant 0 : index
    %c0_0 = arith.constant 0 : index
    %c0_1 = arith.constant 0 : index
    %c0_2 = arith.constant 0 : index
    %0 = vector.load %arg2[%c0, %c0_0, %c0_1, %c0_2] : memref<1x3x16x32xf32, #tpu.memory_space<vmem>>, vector<1x3x16x32xf32>
    %c0_3 = arith.constant 0 : index
    %c0_4 = arith.constant 0 : index
    %c0_5 = arith.constant 0 : index
    %c0_6 = arith.constant 0 : index
    %1 = vector.load %arg3[%c0_3, %c0_4, %c0_5, %c0_6] : memref<1x3x1x32xf32, #tpu.memory_space<vmem>>, vector<1x3x1x32xf32>
    %2 = vector.broadcast %1 : vector<1x3x1x32xf32> to vector<1x3x16x32xf32>
    %3 = arith.addf %0, %2 : vector<1x3x16x32xf32>
    %c0_7 = arith.constant 0 : index
    %c0_8 = arith.constant 0 : index
    %c0_9 = arith.constant 0 : index
    %c0_10 = arith.constant 0 : index
    %4 = vector.load %arg4[%c0_7, %c0_8, %c0_9, %c0_10] : memref<1x1x16x32xf32, #tpu.memory_space<vmem>>, vector<1x1x16x32xf32>
    %5 = vector.broadcast %4 : vector<1x1x16x32xf32> to vector<1x3x16x32xf32>
    %6 = arith.addf %3, %5 : vector<1x3x16x32xf32>
    %c0_11 = arith.constant 0 : index
    %c0_12 = arith.constant 0 : index
    %c0_13 = arith.constant 0 : index
    %c0_14 = arith.constant 0 : index
    %7 = vector.load %arg5[%c0_11, %c0_12, %c0_13, %c0_14] : memref<1x3x16x32xf32, #tpu.memory_space<vmem>>, vector<1x3x16x32xf32>
    tpu.vector_store %arg5[%c0_11, %c0_12, %c0_13, %c0_14], %6 {strides = array<i32>} : memref<1x3x16x32xf32, #tpu.memory_space<vmem>>, vector<1x3x16x32xf32>,
    return
  }
  func.func @transform_0(%arg0: i32, %arg1: i32) -> (i32, i32, i32, i32) {
    %c0_i32 = arith.constant 0 : i32
    %c0_i32_0 = arith.constant 0 : i32
    %c0_i32_1 = arith.constant 0 : i32
    return %arg1, %c0_i32, %arg0, %c0_i32_0 : i32, i32, i32, i32
  }
  func.func @transform_1(%arg0: i32, %arg1: i32) -> (i32, i32, i32, i32) {
    %c0_i32 = arith.constant 0 : i32
    %c0_i32_0 = arith.constant 0 : i32
    %c0_i32_1 = arith.constant 0 : i32
    %c0_i32_2 = arith.constant 0 : i32
    %c0_i32_3 = arith.constant 0 : i32
    return %c0_i32, %c0_i32_0, %c0_i32_1, %c0_i32_2 : i32, i32, i32, i32
  }
  func.func @transform_2(%arg0: i32, %arg1: i32) -> (i32, i32, i32, i32) {
    %c0_i32 = arith.constant 0 : i32
    %c0_i32_0 = arith.constant 0 : i32
    %c0_i32_1 = arith.constant 0 : i32
    %c0_i32_2 = arith.constant 0 : i32
    return %c0_i32, %c0_i32_0, %arg0, %c0_i32_1 : i32, i32, i32, i32
  }
  func.func @transform_3(%arg0: i32, %arg1: i32) -> (i32, i32, i32, i32) {
    %c0_i32 = arith.constant 0 : i32
    %c0_i32_0 = arith.constant 0 : i32
    %c0_i32_1 = arith.constant 0 : i32
    return %arg1, %c0_i32, %arg0, %c0_i32_0 : i32, i32, i32, i32
  }
}

</mosaic_0001>

<llo_original>
// kernel: tpu_custom_call.1
$region0: #{tpu_custom_call.1}
  #allocation0 [shape = 'u32[]', space=smem, size = 0x4, offset = 0x4, fixed_abs, tag = 'smem constant byte address 0x4 - core index']
  #allocation1 [shape = 'u32[144,128]{1,0:T(1,128)}', space=vmem, size = 0x12000, scoped, tag = 'internal scratch']
  %s0 = inlined_call_operand.hbm [shape: f32[2,3,16,32], index: 0, kind: input, shape index: {}]
  %s1 = inlined_call_operand.vmem [shape: f32[1,3,1,32], index: 1, kind: input, shape index: {}]
  %s2 = inlined_call_operand.hbm [shape: f32[1,1,16,32], index: 2, kind: input, shape index: {}]
  %s3 = inlined_call_operand.hbm [shape: f32[2,3,16,32], index: 3, kind: output, shape index: {}]
  %s4 = sld [smem:[#allocation0]]
  $region53: #{tpu_custom_call.1} parent=0
    _
  %s6 = ssub.s32 1, %s4
  %s7 = scalar_select 0, %s6, %s4
  $region1: #{tpu_custom_call.1} parent=0
    #allocation2 [shape = 'u8[49152]{0}', space=vmem, size = 0xc000, scoped, tag = 'input window, operand 0']
    #allocation3 [shape = 's32[2]{0}', space=sflag, size = 0x8, scoped, tag = 'scoped memory for tpu_custom_call.1']
    #allocation4 [shape = 's32[2]{0}', space=sflag, size = 0x8, scoped, tag = 'scoped memory for tpu_custom_call.1']
    #allocation5 [shape = 'u8[8192]{0}', space=vmem, size = 0x2000, scoped, tag = 'input window, operand 2, single buffered']
    #allocation6 [shape = 's32[1]{0}', space=sflag, size = 0x4, scoped, tag = 'scoped memory for tpu_custom_call.1']
    #allocation7 [shape = 'u8[49152]{0}', space=vmem, size = 0xc000, scoped, tag = 'output window, operand 0']
    %8 = vsyncpa [#allocation3], 0
    %s9 = scalar_lea.sflag [#allocation3], 1
    %10 = vsyncpa %s9, 0
    %11 = vsyncpa [#allocation6], 0
    %12 = vsyncpa [#allocation4], 0
    %s13 = scalar_lea.sflag [#allocation4], 1
    %14 = vsyncpa %s13, 0
    loop: start=0, step=1, limit=4
    $region2: #{tpu_custom_call.1} parent=1 // loop_pre_header
      _
    $region3: #{tpu_custom_call.1} parent=1 // loop_header
      %s16 = sphi 0, %s20
      %p17 = scmp.ge.s32.totalorder %s16, 4
      %s23 = sphi 0, %s35
      %s24 = sphi 0, %s31
      %s25 = sphi 0, %s23
      %s26 = sphi 0, %s24
      %s27 = sphi 0, %s25
      %s28 = sphi 0, %s26
      %s40 = sphi 0, %s42
      %s43 = sphi 0, %s40
      %s44 = sphi 0, %s43
      %s60 = sphi 0, %s44
      %s64 = sphi 0, %s64
      %s66 = sphi 0, %s64
      %s67 = sphi 0, %s66
      %s81 = sphi 0, %s67
      %s87 = sphi 0, %s89
      %s90 = sphi 0, %s87
      %s91 = sphi 0, %s90
      %s107 = sphi 0, %s91
      %s115 = sphi 0, %s117
      %s118 = sphi 0, %s115
      %s119 = sphi 0, %s118
      %s135 = sphi 0, %s119
    $region4: #{tpu_custom_call.1} parent=1 // loop_header_branch
      %19 = sbr.rel (%p17) target = $region8
    $region5: #{tpu_custom_call.1} parent=1 // loop_body
      %s21 = ssub.s32 %s16, 1
      %s22 = ssub.s32 %s16, 2
      %s29 = sadd.s32 1, %s24
      %p30 = scmp.ge.s32.totalorder %s29, 2
      %s31 = scalar_select %p30, 0, %s29
      %s32 = sadd.s32 1, %s23
      %s33 = scalar_select %p30, %s32, %s23
      %p34 = scmp.ge.s32.totalorder %s33, 1
      %s35 = scalar_select %p34, 0, %s33
      %s36 = ssub.s32 %s24, %s31
      %s37 = ssub.s32 %s23, %s35
      %s38 = sor.u32 %s36, %s37
      %p39 = scmp.eq.s32.totalorder %s38, 0
      %s41 = sadd.s32 %s40, 1
      %s42 = scalar_select %p39, %s40, %s41
      %p45 = pneg %p39
      %p46 = scmp.eq.s32.totalorder %s16, 1
      %p47 = por %p45, %p46
      %p48 = scmp.ne.s32.totalorder %s40, %s43
      %p49 = scmp.eq.s32.totalorder %s16, 0
      %p50 = por %p48, %p49
      %p51 = scmp.ne.s32.totalorder %s40, %s43
      %p52 = scmp.eq.s32.totalorder %s21, 1
      %p53 = por %p51, %p52
      %p54 = scmp.ne.s32.totalorder %s43, %s44
      %p55 = scmp.eq.s32.totalorder %s21, 0
      %p56 = por %p54, %p55
      %p57 = scmp.ne.s32.totalorder %s43, %s44
      %p58 = scmp.eq.s32.totalorder %s22, 1
      %p59 = por %p57, %p58
      %p61 = scmp.ne.s32.totalorder %s44, %s60
      %p62 = scmp.eq.s32.totalorder %s22, 0
      %p63 = por %p61, %p62
      %s65 = sadd.s32 %s64, 1
      %p68 = scmp.eq.s32.totalorder %s16, 1
      %p69 = scmp.ne.s32.totalorder %s64, %s66
      %p70 = scmp.eq.s32.totalorder %s16, 0
      %p71 = por %p69, %p70
      %p72 = scmp.ne.s32.totalorder %s64, %s66
      %p73 = scmp.eq.s32.totalorder %s21, 1
      %p74 = por %p72, %p73
      %p75 = scmp.ne.s32.totalorder %s66, %s67
      %p76 = scmp.eq.s32.totalorder %s21, 0
      %p77 = por %p75, %p76
      %p78 = scmp.ne.s32.totalorder %s66, %s67
      %p79 = scmp.eq.s32.totalorder %s22, 1
      %p80 = por %p78, %p79
      %p82 = scmp.ne.s32.totalorder %s67, %s81
      %p83 = scmp.eq.s32.totalorder %s22, 0
      %p84 = por %p82, %p83
      %s85 = ssub.s32 %s23, %s35
      %p86 = scmp.eq.s32.totalorder %s85, 0
      %s88 = sadd.s32 %s87, 1
      %s89 = scalar_select %p86, %s87, %s88
      %p92 = pneg %p86
      %p93 = scmp.eq.s32.totalorder %s16, 1
      %p94 = por %p92, %p93
      %p95 = scmp.ne.s32.totalorder %s87, %s90
      %p96 = scmp.eq.s32.totalorder %s16, 0
      %p97 = por %p95, %p96
      %p98 = scmp.ne.s32.totalorder %s87, %s90
      %p99 = scmp.eq.s32.totalorder %s21, 1
      %p100 = por %p98, %p99
      %p101 = scmp.ne.s32.totalorder %s90, %s91
      %p102 = scmp.eq.s32.totalorder %s21, 0
      %p103 = por %p101, %p102
      %p104 = scmp.ne.s32.totalorder %s90, %s91
      %p105 = scmp.eq.s32.totalorder %s22, 1
      %p106 = por %p104, %p105
      %p108 = scmp.ne.s32.totalorder %s91, %s107
      %p109 = scmp.eq.s32.totalorder %s22, 0
      %p110 = por %p108, %p109
      %s111 = ssub.s32 %s24, %s31
      %s112 = ssub.s32 %s23, %s35
      %s113 = sor.u32 %s111, %s112
      %p114 = scmp.eq.s32.totalorder %s113, 0
      %s116 = sadd.s32 %s115, 1
      %s117 = scalar_select %p114, %s115, %s116
      %p120 = pneg %p114
      %p121 = scmp.eq.s32.totalorder %s16, 1
      %p122 = por %p120, %p121
      %p123 = scmp.ne.s32.totalorder %s115, %s118
      %p124 = scmp.eq.s32.totalorder %s16, 0
      %p125 = por %p123, %p124
      %p126 = scmp.ne.s32.totalorder %s115, %s118
      %p127 = scmp.eq.s32.totalorder %s21, 1
      %p128 = por %p126, %p127
      %p129 = scmp.ne.s32.totalorder %s118, %s119
      %p130 = scmp.eq.s32.totalorder %s21, 0
      %p131 = por %p129, %p130
      %p132 = scmp.ne.s32.totalorder %s118, %s119
      %p133 = scmp.eq.s32.totalorder %s22, 1
      %p134 = por %p132, %p133
      %p136 = scmp.ne.s32.totalorder %s119, %s135
      %p137 = scmp.eq.s32.totalorder %s22, 0
      %p138 = por %p136, %p137
      %p139 = scmp.le.s32.totalorder 1, %s16
      %p140 = scmp.lt.s32.totalorder %s16, 3
      %p141 = pnand %p139, %p140
      %p142 = pneg %p141
      // Predicated region
      $region9: #{tpu_custom_call.1} parent=5 // pred_check
        _
      $region10: #{tpu_custom_call.1} parent=5 // pred_check_branch
        %144 = sbr.rel (%p141) target = $region12
      $region11: #{tpu_custom_call.1} parent=5 // pred_region
        %s145 = ssub.s32 %s16, 1
        // Predicated region
        $region13: #{tpu_custom_call.1} parent=11 // pred_check
          %p146 = pneg %p77
        $region14: #{tpu_custom_call.1} parent=11 // pred_check_branch
          %148 = sbr.rel (%p146) target = $region16
        $region15: #{tpu_custom_call.1} parent=11 // pred_region
          _
        $region16: #{tpu_custom_call.1} parent=11 // pred_fallthru
          _
        // Predicated region
        $region17: #{tpu_custom_call.1} parent=11 // pred_check
          %p149 = pneg %p103
        $region18: #{tpu_custom_call.1} parent=11 // pred_check_branch
          %151 = sbr.rel (%p149) target = $region20
        $region19: #{tpu_custom_call.1} parent=11 // pred_region
          %s152 = smul.u32 2, %s25
          %s154 = ssub.s32 256, 256
          %155 = vsyncadd [#allocation6], %s154
          %s156 = smul.addr %s152, 128
          %s157 = scalar_lea.hbm %s2, %s156
          %s158 = sshll.u32 [#allocation5], 4
          %s159 = int_to_ptr.vmem [resolvable:$true] %s158
          %164 = dma.hbm_to_vmem [thread:$0]  %s157, 256, %s159, [#allocation6], 128, 128, 8
        $region20: #{tpu_custom_call.1} parent=11 // pred_fallthru
          _
      $region12: #{tpu_custom_call.1} parent=5 // pred_fallthru
        _
      %p165 = scmp.lt.s32.totalorder %s16, 2
      // Predicated region
      $region21: #{tpu_custom_call.1} parent=5 // pred_check
        %p166 = pneg %p165
      $region22: #{tpu_custom_call.1} parent=5 // pred_check_branch
        %168 = sbr.rel (%p166) target = $region24
      $region23: #{tpu_custom_call.1} parent=5 // pred_region
        // Predicated region
        $region25: #{tpu_custom_call.1} parent=23 // pred_check
          %p169 = pneg %p50
        $region26: #{tpu_custom_call.1} parent=23 // pred_check_branch
          %171 = sbr.rel (%p169) target = $region28
        $region27: #{tpu_custom_call.1} parent=23 // pred_region
          %s172 = sand.u32 %s40, 1
          %s173 = scalar_lea.sflag [#allocation3], %s172
          %s174 = sand.u32 %s40, 1
          %s175 = smul.addr %s174, 48
          %s176 = scalar_lea.vmem [#allocation2], %s175
          %s177 = smul.u32 2, %s23
          %s179 = ssub.s32 768, 768
          %180 = vsyncadd %s173, %s179
          %s181 = smul.addr %s24, 6
          %s182 = sadd.s32 %s177, %s181
          %s183 = smul.addr %s182, 128
          %s184 = scalar_lea.hbm %s0, %s183
          %s185 = sshll.u32 %s176, 4
          %s186 = int_to_ptr.vmem [resolvable:$true] %s185
          %191 = dma.hbm_to_vmem [thread:$0]  %s184, 768, %s186, %s173, 128, 128, 8
        $region28: #{tpu_custom_call.1} parent=23 // pred_fallthru
          _
      $region24: #{tpu_custom_call.1} parent=5 // pred_fallthru
        _
      %p192 = scmp.le.s32.totalorder 1, %s16
      %p193 = scmp.lt.s32.totalorder %s16, 3
      %p194 = pnand %p192, %p193
      %p195 = pneg %p194
      // Predicated region
      $region29: #{tpu_custom_call.1} parent=5 // pred_check
        _
      $region30: #{tpu_custom_call.1} parent=5 // pred_check_branch
        %197 = sbr.rel (%p194) target = $region32
      $region31: #{tpu_custom_call.1} parent=5 // pred_region
        %s198 = ssub.s32 %s16, 1
        %s199 = sand.u32 %s43, 1
        %s200 = scalar_lea.sflag [#allocation3], %s199
        %s201 = sand.u32 %s43, 1
        %s202 = smul.addr %s201, 48
        %s203 = scalar_lea.vmem [#allocation2], %s202
        // Predicated region
        $region33: #{tpu_custom_call.1} parent=31 // pred_check
          %p204 = pneg %p56
        $region34: #{tpu_custom_call.1} parent=31 // pred_check_branch
          %206 = sbr.rel (%p204) target = $region36
        $region35: #{tpu_custom_call.1} parent=31 // pred_region
          %207 = dma.done %s200, 768
        $region36: #{tpu_custom_call.1} parent=31 // pred_fallthru
          _
        // Predicated region
        $region37: #{tpu_custom_call.1} parent=31 // pred_check
          %p208 = pneg %p103
        $region38: #{tpu_custom_call.1} parent=31 // pred_check_branch
          %210 = sbr.rel (%p208) target = $region40
        $region39: #{tpu_custom_call.1} parent=31 // pred_region
          %211 = dma.done [#allocation6], 256
        $region40: #{tpu_custom_call.1} parent=31 // pred_fallthru
          _
        %s212 = sand.u32 %s43, 1
        %s213 = scalar_lea.sflag [#allocation3], %s212
        %s214 = sand.u32 %s43, 1
        %s215 = smul.addr %s214, 48
        %s216 = scalar_lea.vmem [#allocation2], %s215
        %p217 = pneg %p56
        %p218 = pneg %p53
        %p219 = pneg %p77
        %p220 = pneg %p74
        %p221 = pneg %p103
        %p222 = pneg %p100
        %p223 = pneg %p131
        %p224 = pneg %p128
        %s225 = sand.u32 %s118, 1
        %s226 = scalar_lea.sflag [#allocation4], %s225
        %s227 = sand.u32 %s118, 1
        %s228 = smul.addr %s227, 48
        %s229 = scalar_lea.vmem [#allocation7], %s228
        %s230 = smul.u32 2, %s25
        %s231 = smul.u32 2, %s25
        %s232 = smul.u32 2, %s25
        %v233 = vld [vmem:[%s203] sm:$0xff]
        %v234 = vld [vmem:[%s203 + $0x8] sm:$0xff]
        %v235 = vld [vmem:[%s203 + $0x10] sm:$0xff]
        %v236 = vld [vmem:[%s203 + $0x18] sm:$0xff]
        %v237 = vld [vmem:[%s203 + $0x20] sm:$0xff]
        %v238 = vld [vmem:[%s203 + $0x28] sm:$0xff]
        %v239 = vld [vmem:[%s1] sm:$0x1]
        %v240 = vld [vmem:[%s1 + $0x1] sm:$0x1]
        %v241 = vld [vmem:[%s1 + $0x2] sm:$0x1]
        %v245 = vlaneseq
        %v246 = vshrl.u32 %v245, 7
        %v247 = vsub.s32 0, %v246
        %v248 = vrot.slane %v239, %v247
        %v249 = vlaneseq
        %v250 = vshrl.u32 %v249, 7
        %v251 = vsub.s32 0, %v250
        %v252 = vrot.slane %v240, %v251
        %v253 = vlaneseq
        %v254 = vshrl.u32 %v253, 7
        %v255 = vsub.s32 0, %v254
        %v256 = vrot.slane %v241, %v255
        %v260 = vadd.f32 %v233, %v248
        %v261 = vadd.f32 %v234, %v248
        %v262 = vadd.f32 %v235, %v252
        %v263 = vadd.f32 %v236, %v252
        %v264 = vadd.f32 %v237, %v256
        %v265 = vadd.f32 %v238, %v256
        %v266 = vld [vmem:[#allocation5] sm:$0xff]
        %v267 = vld [vmem:[#allocation5 + $0x8] sm:$0xff]
        %v268 = vadd.f32 %v260, %v266
        %v269 = vadd.f32 %v261, %v267
        %v270 = vadd.f32 %v262, %v266
        %v271 = vadd.f32 %v263, %v267
        %v272 = vadd.f32 %v264, %v266
        %v273 = vadd.f32 %v265, %v267
        %vm274 = vcmask 261120
        %275 = vst.msk [vmem:[%s229] sm:$0xff] %vm274, %v268
        %276 = vst.msk [vmem:[%s229 + $0x8] sm:$0xff] %vm274, %v269
        %277 = vst.msk [vmem:[%s229 + $0x10] sm:$0xff] %vm274, %v270
        %278 = vst.msk [vmem:[%s229 + $0x18] sm:$0xff] %vm274, %v271
        %279 = vst.msk [vmem:[%s229 + $0x20] sm:$0xff] %vm274, %v272
        %280 = vst.msk [vmem:[%s229 + $0x28] sm:$0xff] %vm274, %v273
        %s281 = sand.u32 %s118, 1
        %s282 = scalar_lea.sflag [#allocation4], %s281
        %s283 = sand.u32 %s118, 1
        %s284 = smul.addr %s283, 48
        %s285 = scalar_lea.vmem [#allocation7], %s284
        // Predicated region
        $region41: #{tpu_custom_call.1} parent=31 // pred_check
          %p286 = pneg %p128
        $region42: #{tpu_custom_call.1} parent=31 // pred_check_branch
          %288 = sbr.rel (%p286) target = $region44
        $region43: #{tpu_custom_call.1} parent=31 // pred_region
          %s289 = smul.u32 2, %s25
          %s291 = ssub.s32 768, 768
          %292 = vsyncadd %s282, %s291
          %s293 = smul.addr %s26, 6
          %s294 = sadd.s32 %s289, %s293
          %s295 = smul.addr %s294, 128
          %s296 = scalar_lea.hbm %s3, %s295
          %s297 = sshll.u32 %s285, 4
          %s298 = int_to_ptr.vmem [resolvable:$true] %s297
          %303 = dma.vmem_to_hbm [thread:$0]  %s298, 768, %s296, %s282, 128, 128, 8
        $region44: #{tpu_custom_call.1} parent=31 // pred_fallthru
          _
      $region32: #{tpu_custom_call.1} parent=5 // pred_fallthru
        _
      %p304 = scmp.le.s32.totalorder 2, %s16
      // Predicated region
      $region45: #{tpu_custom_call.1} parent=5 // pred_check
        %p305 = pneg %p304
      $region46: #{tpu_custom_call.1} parent=5 // pred_check_branch
        %307 = sbr.rel (%p305) target = $region48
      $region47: #{tpu_custom_call.1} parent=5 // pred_region
        %s308 = ssub.s32 %s16, 2
        // Predicated region
        $region49: #{tpu_custom_call.1} parent=47 // pred_check
          %p309 = pneg %p134
        $region50: #{tpu_custom_call.1} parent=47 // pred_check_branch
          %311 = sbr.rel (%p309) target = $region52
        $region51: #{tpu_custom_call.1} parent=47 // pred_region
          %s312 = sand.u32 %s119, 1
          %s313 = scalar_lea.sflag [#allocation4], %s312
          %s314 = sand.u32 %s119, 1
          %s315 = smul.addr %s314, 48
          %s316 = scalar_lea.vmem [#allocation7], %s315
          %317 = dma.done %s313, 768
        $region52: #{tpu_custom_call.1} parent=47 // pred_fallthru
          _
      $region48: #{tpu_custom_call.1} parent=5 // pred_fallthru
        _
    $region6: #{tpu_custom_call.1} parent=1 // loop_footer
      %s20 = sadd.s32 1, %s16
    $region7: #{tpu_custom_call.1} parent=1 // loop_footer_branch
      %15 = sbr.rel target = $region3
    $region8: #{tpu_custom_call.1} parent=1 // loop_exit
      _
    %318 = vsyncpa [#allocation3], 1
    %s319 = scalar_lea.sflag [#allocation3], 1
    %320 = vsyncpa %s319, 1
    %321 = vsyncpa [#allocation6], 1
    %322 = vsyncpa [#allocation4], 1
    %s323 = scalar_lea.sflag [#allocation4], 1
    %324 = vsyncpa %s323, 1

</llo_original>
